<compile_context>
chip_gen: v7x
topology: tpu7x:2x2x1
jax: 0.10.0
libtpu: 0.0.40
codegen_flags: <defaults>
</compile_context>

<pallas_src>
import functools

import jax
import jax.numpy as jnp
from jax.experimental import pallas as pl
from jax.experimental.pallas import tpu as pltpu


def _glu_block_kernel(x_cur_ref, x_prev_ref, w_ref, o_ref, *,
                      k, dilation, c_out, time_tile):
    # x_cur_ref : (1, c_in, T_tile)       current time tile of x
    # x_prev_ref: (1, c_in, T_tile)       previous time tile of x (halo source)
    # w_ref     : (3*c_out, k*c_in + 1)   packed [conv_f; conv_g; residual] + biases
    # o_ref     : (1, c_out, T_tile)
    p = (k - 1) * dilation
    cur = x_cur_ref[0]                                           # (c_in, Tt)

    if p > 0:
        prev = x_prev_ref[0]                                     # (c_in, Tt)
        prev_tail = prev[:, time_tile - p:]                      # (c_in, p)
        # First time tile: causal zero padding instead of the previous tile.
        halo = jnp.where(pl.program_id(1) == 0,
                         jnp.zeros_like(prev_tail), prev_tail)
        xw = jnp.concatenate([halo, cur], axis=-1)               # (c_in, Tt + p)
    else:
        xw = cur

    # Build the (k*c_in + 1, Tt) slab: k time-shifted tap slices + ones row for bias.
    rows = [xw[:, j * dilation: j * dilation + time_tile] for j in range(k)]
    rows.append(jnp.ones((1, time_tile), xw.dtype))
    slab = jnp.concatenate(rows, axis=0).astype(w_ref.dtype)

    # Single fused matmul: conv_f + conv_g + 1x1 residual + all biases.
    z = jnp.dot(w_ref[...], slab, preferred_element_type=jnp.float32)  # (3*c_out, Tt)

    f = jnp.tanh(z[:c_out])
    # sigmoid(z) == 0.5 * (tanh(0.5*z) + 1): one EUP op, no exp/divide, no inf.
    g = 0.5 * (jnp.tanh(0.5 * z[c_out:2 * c_out]) + 1.0)
    res = z[2 * c_out:]
    # TODO(synk): nn.Dropout is identity in eval mode; training-mode dropout not implemented.
    o_ref[0] = jnp.maximum(f * g + res, 0.0).astype(o_ref.dtype)


def pack_glu_params(wf, bf, wg, bg, wr=None, br=None, *, compute_dtype=jnp.float32):
    """Pack conv_f / conv_g / residual weights + biases into one matmul operand.

    Returns W of shape (3*c_out, k*c_in + 1):
      rows [0:c_out]        conv_f taps (tap-major columns) | bias column
      rows [c_out:2c_out]   conv_g taps                     | bias column
      rows [2c_out:3c_out]  residual weight in the last-tap columns (tap k-1
                            corresponds to the un-shifted input), zeros elsewhere.
                            Identity matrix if wr is None (c_in == c_out).
    """
    c_out, c_in, k = wf.shape

    def taps(w):  # (c_out, c_in, k) -> (c_out, k*c_in), column j*c_in + c = w[:, c, j]
        return jnp.transpose(w, (0, 2, 1)).reshape(c_out, k * c_in)

    if wr is not None:
        R = wr[:, :, 0].astype(jnp.float32)
        b_r = br.astype(jnp.float32)
    else:
        assert c_in == c_out, "identity residual requires c_in == c_out"
        # NOTE: with bf16 compute_dtype the identity residual goes through the
        # bf16 matmul operand (tiny deviation vs an exact f32 copy).
        R = jnp.eye(c_out, dtype=jnp.float32)
        b_r = jnp.zeros((c_out,), jnp.float32)

    Wr = jnp.zeros((c_out, k * c_in), jnp.float32).at[:, (k - 1) * c_in:].set(R)

    def with_bias(wt, b):
        return jnp.concatenate([wt, b[:, None]], axis=1)

    W = jnp.concatenate([
        with_bias(taps(wf).astype(jnp.float32), bf.astype(jnp.float32)),
        with_bias(taps(wg).astype(jnp.float32), bg.astype(jnp.float32)),
        with_bias(Wr, b_r),
    ], axis=0)
    return W.astype(compute_dtype)


def glu_temporal_block_forward(x, wf, bf, wg, bg, wr=None, br=None, *,
                               dilation, time_tile=None,
                               compute_dtype=jnp.float32, out_dtype=None,
                               packed_w=None):
    """Fused Pallas forward of GLUTemporalBlock (inference; dropout = identity).

    x      : (B, c_in, T)
    wf, wg : (c_out, c_in, k)   conv_f / conv_g weights (PyTorch layout)
    bf, bg : (c_out,)
    wr     : (c_out, c_in, 1) or None (None => c_in == c_out, identity residual)
    br     : (c_out,) or None
    """
    B, c_in, T = x.shape
    c_out, c_in2, k = wf.shape
    assert c_in2 == c_in
    p = (k - 1) * dilation
    out_dtype = x.dtype if out_dtype is None else out_dtype

    # Time tiling: 512-2048 lane output tiles when T allows it, else whole T.
    if time_tile is None:
        time_tile = T
        for cand in (2048, 1024, 512, 256, 128):
            if T % cand == 0:
                time_tile = cand
                break
    assert T % time_tile == 0, "time_tile must divide T"
    assert p <= time_tile, "halo (k-1)*dilation must fit within one time tile"
    n_t = T // time_tile

    # Packed weights (hoist out of the hot path for serving by passing packed_w).
    W = pack_glu_params(wf, bf, wg, bg, wr, br, compute_dtype=compute_dtype) \
        if packed_w is None else packed_w
    K = k * c_in + 1

    kernel = functools.partial(_glu_block_kernel, k=k, dilation=dilation,
                               c_out=c_out, time_tile=time_tile)

    # VMEM budget: double-buffered blocks + in-kernel f32 temporaries, with 2x
    # headroom, clamped to [32 MiB default, 64 MiB v7x physical].
    blk = 2 * (2 * c_in * time_tile * x.dtype.itemsize
               + c_out * time_tile * jnp.dtype(out_dtype).itemsize)
    blk += 2 * 3 * c_out * K * jnp.dtype(compute_dtype).itemsize
    tmp = (K + 5 * c_out) * time_tile * 4
    vmem_limit = int(min(64 * 2 ** 20, max(32 * 2 ** 20, 2 * (blk + tmp))))

    return pl.pallas_call(
        kernel,
        out_shape=jax.ShapeDtypeStruct((B, c_out, T), out_dtype),
        grid_spec=pltpu.PrefetchScalarGridSpec(
            num_scalar_prefetch=0,
            grid=(B, n_t),
            in_specs=[
                # current time tile of x
                pl.BlockSpec((1, c_in, time_tile), lambda b, t: (b, 0, t)),
                # previous time tile of x (halo); clamped to 0 for the first tile,
                # whose halo is zeroed in-kernel (causal left padding).
                pl.BlockSpec((1, c_in, time_tile),
                             lambda b, t: (b, 0, jnp.maximum(t - 1, 0))),
                # packed weights (whole array, resident in VMEM)
                pl.BlockSpec((3 * c_out, K), lambda b, t: (0, 0)),
            ],
            out_specs=pl.BlockSpec((1, c_out, time_tile), lambda b, t: (b, 0, t)),
        ),
        compiler_params=pltpu.CompilerParams(
            dimension_semantics=("parallel", "parallel"),
            vmem_limit_bytes=vmem_limit),
    )(x, x, W)


def _reference_forward(x, wf, bf, wg, bg, wr, br, *, dilation):
    """Pure-JAX reference matching the PyTorch forward (dropout = identity)."""
    B, c_in, T = x.shape
    c_out, _, k = wf.shape
    p = (k - 1) * dilation
    xp = jnp.pad(x, ((0, 0), (0, 0), (p, 0)))

    def causal_conv(w, bias):
        out = jnp.zeros((B, c_out, T), jnp.float32)
        for j in range(k):
            xs = xp[:, :, j * dilation: j * dilation + T]
            out = out + jnp.einsum('oc,bct->bot', w[:, :, j], xs)
        return out + bias[None, :, None]

    f = jnp.tanh(causal_conv(wf, bf))
    g = jax.nn.sigmoid(causal_conv(wg, bg))
    y = f * g
    if wr is not None:
        res = jnp.einsum('oc,bct->bot', wr[:, :, 0], x) + br[None, :, None]
    else:
        res = x
    return jnp.maximum(y + res, 0.0)


if __name__ == "__main__":
    # Small shapes consistent with the module; T multiple of 128 => lane-dense stores.
    B = 2          # batch
    c_in = 4       # input channels
    c_out = 32     # output channels
    k = 3          # kernel size
    dilation = 2
    T = 128        # sequence length

    key = jax.random.PRNGKey(0)
    kx, kwf, kbf, kwg, kbg, kwr, kbr = jax.random.split(key, 7)

    x = jax.random.normal(kx, (B, c_in, T), dtype=jnp.float32)
    fan = 1.0 / (c_in * k) ** 0.5
    wf = jax.random.uniform(kwf, (c_out, c_in, k), jnp.float32, -fan, fan)
    bf = jax.random.uniform(kbf, (c_out,), jnp.float32, -fan, fan)
    wg = jax.random.uniform(kwg, (c_out, c_in, k), jnp.float32, -fan, fan)
    bg = jax.random.uniform(kbg, (c_out,), jnp.float32, -fan, fan)
    fan_r = 1.0 / c_in ** 0.5
    wr = jax.random.uniform(kwr, (c_out, c_in, 1), jnp.float32, -fan_r, fan_r)
    br = jax.random.uniform(kbr, (c_out,), jnp.float32, -fan_r, fan_r)

    out = glu_temporal_block_forward(x, wf, bf, wg, bg, wr, br, dilation=dilation)
    out = jax.block_until_ready(out)

    ref = _reference_forward(x, wf, bf, wg, bg, wr, br, dilation=dilation)
    assert out.shape == (B, c_out, T), out.shape
    max_err = float(jnp.max(jnp.abs(out - ref)))
    assert jnp.allclose(out, ref, atol=1e-3, rtol=1e-3), \
        f"mismatch vs reference, max abs err {max_err}"

    print("KERNEL_OK")
</pallas_src>

<mosaic_0001>
module attributes {stable_mosaic.version = 11 : i64} {
  func.func @_glu_block_kernel(%arg0: i32, %arg1: i32, %arg2: memref<1x4x128xf32, #tpu.memory_space<vmem>>, %arg3: memref<1x4x128xf32, #tpu.memory_space<vmem>>, %arg4: memref<96x13xf32, #tpu.memory_space<vmem>>, %arg5: memref<1x32x128xf32, #tpu.memory_space<vmem>>) attributes {dimension_semantics = [#tpu.dimension_semantics<parallel>, #tpu.dimension_semantics<parallel>], iteration_bounds = array<i64: 2, 1>, scalar_prefetch = 0 : i64, scratch_operands = 0 : i64, tpu.core_type = #tpu.core_type<tc>, window_params = [{transform_indices = @transform_0, window_bounds = array<i64: 1, 4, 128>}, {transform_indices = @transform_1, window_bounds = array<i64: 1, 4, 128>}, {pipeline_mode = #tpu.pipeline_mode<synchronous>, transform_indices = @transform_2, window_bounds = array<i64: 96, 13>}, {transform_indices = @transform_3, window_bounds = array<i64: 1, 32, 128>}]} {
    %c0 = arith.constant 0 : index
    %c0_0 = arith.constant 0 : index
    %c0_1 = arith.constant 0 : index
    %0 = vector.load %arg2[%c0, %c0_0, %c0_1] : memref<1x4x128xf32, #tpu.memory_space<vmem>>, vector<1x4x128xf32>
    %1 = vector.shape_cast %0 : vector<1x4x128xf32> to vector<4x128xf32>
    %c0_2 = arith.constant 0 : index
    %c0_3 = arith.constant 0 : index
    %c0_4 = arith.constant 0 : index
    %2 = vector.load %arg3[%c0_2, %c0_3, %c0_4] : memref<1x4x128xf32, #tpu.memory_space<vmem>>, vector<1x4x128xf32>
    %3 = vector.shape_cast %2 : vector<1x4x128xf32> to vector<4x128xf32>
    %4 = vector.extract_strided_slice %3 {offsets = [0, 124], sizes = [4, 4], strides = [1, 1]} : vector<4x128xf32> to vector<4x4xf32>
    %c0_i32 = arith.constant 0 : i32
    %5 = arith.cmpi eq, %arg1, %c0_i32 : i32
    %cst = arith.constant 0.000000e+00 : f32
    %6 = vector.broadcast %cst : f32 to vector<4x4xf32>
    %7 = arith.select %5, %6, %4 : vector<4x4xf32>
    %8 = tpu.concatenate %7, %1 in 1 : vector<4x4xf32>, vector<4x128xf32> -> vector<4x132xf32>
    %9 = vector.extract_strided_slice %8 {offsets = [0, 0], sizes = [4, 128], strides = [1, 1]} : vector<4x132xf32> to vector<4x128xf32>
    %10 = vector.extract_strided_slice %8 {offsets = [0, 2], sizes = [4, 128], strides = [1, 1]} : vector<4x132xf32> to vector<4x128xf32>
    %11 = vector.extract_strided_slice %8 {offsets = [0, 4], sizes = [4, 128], strides = [1, 1]} : vector<4x132xf32> to vector<4x128xf32>
    %cst_5 = arith.constant 1.000000e+00 : f32
    %12 = vector.broadcast %cst_5 : f32 to vector<1x128xf32>
    %13 = tpu.concatenate %9, %10, %11, %12 in 0 : vector<4x128xf32>, vector<4x128xf32>, vector<4x128xf32>, vector<1x128xf32> -> vector<13x128xf32>
    %c0_6 = arith.constant 0 : index
    %c0_7 = arith.constant 0 : index
    %14 = vector.load %arg4[%c0_6, %c0_7] : memref<96x13xf32, #tpu.memory_space<vmem>>, vector<96x13xf32>
    %cst_8 = arith.constant dense<0.000000e+00> : vector<96x128xf32>
    %15 = tpu.matmul %14, %13, %cst_8 {dimension_numbers = #tpu.dot_dimension_numbers<[1], [0], [0], [1], [0, 0, 1, 1], [], []>} : vector<96x13xf32>, vector<13x128xf32>, vector<96x128xf32> -> vector<96x128xf32>
    %16 = vector.extract_strided_slice %15 {offsets = [0, 0], sizes = [32, 128], strides = [1, 1]} : vector<96x128xf32> to vector<32x128xf32>
    %17 = math.tanh %16 : vector<32x128xf32>
    %18 = vector.extract_strided_slice %15 {offsets = [32, 0], sizes = [32, 128], strides = [1, 1]} : vector<96x128xf32> to vector<32x128xf32>
    %cst_9 = arith.constant 5.000000e-01 : f32
    %19 = vector.broadcast %cst_9 : f32 to vector<32x128xf32>
    %20 = arith.mulf %19, %18 : vector<32x128xf32>
    %21 = math.tanh %20 : vector<32x128xf32>
    %cst_10 = arith.constant 1.000000e+00 : f32
    %22 = vector.broadcast %cst_10 : f32 to vector<32x128xf32>
    %23 = arith.addf %21, %22 : vector<32x128xf32>
    %cst_11 = arith.constant 5.000000e-01 : f32
    %24 = vector.broadcast %cst_11 : f32 to vector<32x128xf32>
    %25 = arith.mulf %24, %23 : vector<32x128xf32>
    %26 = vector.extract_strided_slice %15 {offsets = [64, 0], sizes = [32, 128], strides = [1, 1]} : vector<96x128xf32> to vector<32x128xf32>
    %27 = arith.mulf %17, %25 : vector<32x128xf32>
    %28 = arith.addf %27, %26 : vector<32x128xf32>
    %cst_12 = arith.constant 0.000000e+00 : f32
    %29 = vector.broadcast %cst_12 : f32 to vector<32x128xf32>
    %30 = arith.maximumf %28, %29 : vector<32x128xf32>
    %c0_13 = arith.constant 0 : index
    %c0_14 = arith.constant 0 : index
    %c0_15 = arith.constant 0 : index
    %31 = vector.load %arg5[%c0_13, %c0_14, %c0_15] : memref<1x32x128xf32, #tpu.memory_space<vmem>>, vector<1x32x128xf32>
    %32 = vector.shape_cast %31 : vector<1x32x128xf32> to vector<32x128xf32>
    %33 = vector.shape_cast %30 : vector<32x128xf32> to vector<1x32x128xf32>
    tpu.vector_store %arg5[%c0_13, %c0_14, %c0_15], %33 {strides = array<i32>} : memref<1x32x128xf32, #tpu.memory_space<vmem>>, vector<1x32x128xf32>,
    return
  }
  func.func @transform_0(%arg0: i32, %arg1: i32) -> (i32, i32, i32) {
    %c0_i32 = arith.constant 0 : i32
    %c0_i32_0 = arith.constant 0 : i32
    return %arg0, %c0_i32, %arg1 : i32, i32, i32
  }
  func.func @transform_1(%arg0: i32, %arg1: i32) -> (i32, i32, i32) {
    %c1_i32 = arith.constant 1 : i32
    %0 = arith.subi %arg1, %c1_i32 : i32
    %c0_i32 = arith.constant 0 : i32
    %1 = arith.maxsi %0, %c0_i32 : i32
    %c0_i32_0 = arith.constant 0 : i32
    %c0_i32_1 = arith.constant 0 : i32
    return %arg0, %c0_i32_0, %1 : i32, i32, i32
  }
  func.func @transform_2(%arg0: i32, %arg1: i32) -> (i32, i32) {
    %c0_i32 = arith.constant 0 : i32
    %c0_i32_0 = arith.constant 0 : i32
    %c0_i32_1 = arith.constant 0 : i32
    return %c0_i32, %c0_i32_0 : i32, i32
  }
  func.func @transform_3(%arg0: i32, %arg1: i32) -> (i32, i32, i32) {
    %c0_i32 = arith.constant 0 : i32
    %c0_i32_0 = arith.constant 0 : i32
    return %arg0, %c0_i32, %arg1 : i32, i32, i32
  }
}

</mosaic_0001>

<llo_original>
// kernel: tpu_custom_call.1
$region0: #{tpu_custom_call.1}
  #allocation0 [shape = 'u32[]', space=smem, size = 0x4, offset = 0x4, fixed_abs, tag = 'smem constant byte address 0x4 - core index']
  #allocation1 [shape = 'u32[144,128]{1,0:T(1,128)}', space=vmem, size = 0x12000, scoped, tag = 'internal scratch']
  %s0 = inlined_call_operand.vmem [shape: f32[2,4,128], index: 0, kind: input, shape index: {}]
  %s1 = inlined_call_operand.vmem [shape: f32[2,4,128], index: 1, kind: input, shape index: {}]
  %s2 = inlined_call_operand.vmem [shape: f32[96,13], index: 2, kind: input, shape index: {}]
  %s3 = inlined_call_operand.hbm [shape: f32[2,32,128], index: 3, kind: output, shape index: {}]
  %s4 = sld [smem:[#allocation0]]
  $region45: #{tpu_custom_call.1} parent=0
    _
  %s6 = ssub.s32 1, %s4
  %s7 = scalar_select 0, %s6, %s4
  $region1: #{tpu_custom_call.1} parent=0
    #allocation2 [shape = 'u8[32768]{0}', space=vmem, size = 0x8000, scoped, tag = 'output window, operand 0']
    #allocation3 [shape = 's32[2]{0}', space=sflag, size = 0x8, scoped, tag = 'scoped memory for tpu_custom_call.1']
    %8 = vsyncpa [#allocation3], 0
    %s9 = scalar_lea.sflag [#allocation3], 1
    %10 = vsyncpa %s9, 0
    loop: start=0, step=1, limit=4
    $region2: #{tpu_custom_call.1} parent=1 // loop_pre_header
      _
    $region3: #{tpu_custom_call.1} parent=1 // loop_header
      %s12 = sphi 0, %s16
      %p13 = scmp.ge.s32.totalorder %s12, 4
      %s19 = sphi 0, %s31
      %s20 = sphi 0, %s27
      %s21 = sphi 0, %s19
      %s22 = sphi 0, %s20
      %s23 = sphi 0, %s21
      %s24 = sphi 0, %s22
      %s36 = sphi 0, %s38
      %s39 = sphi 0, %s36
      %s40 = sphi 0, %s39
      %s56 = sphi 0, %s40
      %s70 = sphi 0, %s72
      %s73 = sphi 0, %s70
      %s74 = sphi 0, %s73
      %s90 = sphi 0, %s74
      %s94 = sphi 0, %s94
      %s96 = sphi 0, %s94
      %s97 = sphi 0, %s96
      %s111 = sphi 0, %s97
      %s119 = sphi 0, %s121
      %s122 = sphi 0, %s119
      %s123 = sphi 0, %s122
      %s139 = sphi 0, %s123
    $region4: #{tpu_custom_call.1} parent=1 // loop_header_branch
      %15 = sbr.rel (%p13) target = $region8
    $region5: #{tpu_custom_call.1} parent=1 // loop_body
      %s17 = ssub.s32 %s12, 1
      %s18 = ssub.s32 %s12, 2
      %s25 = sadd.s32 1, %s20
      %p26 = scmp.ge.s32.totalorder %s25, 1
      %s27 = scalar_select %p26, 0, %s25
      %s28 = sadd.s32 1, %s19
      %s29 = scalar_select %p26, %s28, %s19
      %p30 = scmp.ge.s32.totalorder %s29, 2
      %s31 = scalar_select %p30, 0, %s29
      %s32 = ssub.s32 %s19, %s31
      %s33 = ssub.s32 %s20, %s27
      %s34 = sor.u32 %s32, %s33
      %p35 = scmp.eq.s32.totalorder %s34, 0
      %s37 = sadd.s32 %s36, 1
      %s38 = scalar_select %p35, %s36, %s37
      %p41 = pneg %p35
      %p42 = scmp.eq.s32.totalorder %s12, 1
      %p43 = por %p41, %p42
      %p44 = scmp.ne.s32.totalorder %s36, %s39
      %p45 = scmp.eq.s32.totalorder %s12, 0
      %p46 = por %p44, %p45
      %p47 = scmp.ne.s32.totalorder %s36, %s39
      %p48 = scmp.eq.s32.totalorder %s17, 1
      %p49 = por %p47, %p48
      %p50 = scmp.ne.s32.totalorder %s39, %s40
      %p51 = scmp.eq.s32.totalorder %s17, 0
      %p52 = por %p50, %p51
      %p53 = scmp.ne.s32.totalorder %s39, %s40
      %p54 = scmp.eq.s32.totalorder %s18, 1
      %p55 = por %p53, %p54
      %p57 = scmp.ne.s32.totalorder %s40, %s56
      %p58 = scmp.eq.s32.totalorder %s18, 0
      %p59 = por %p57, %p58
      %s60 = ssub.s32 %s20, 1
      %p61 = scmp.gt.s32.totalorder %s60, 0
      %s62 = scalar_select %p61, %s60, 0
      %s63 = ssub.s32 %s27, 1
      %p64 = scmp.gt.s32.totalorder %s63, 0
      %s65 = scalar_select %p64, %s63, 0
      %s66 = ssub.s32 %s19, %s31
      %s67 = ssub.s32 %s62, %s65
      %s68 = sor.u32 %s66, %s67
      %p69 = scmp.eq.s32.totalorder %s68, 0
      %s71 = sadd.s32 %s70, 1
      %s72 = scalar_select %p69, %s70, %s71
      %p75 = pneg %p69
      %p76 = scmp.eq.s32.totalorder %s12, 1
      %p77 = por %p75, %p76
      %p78 = scmp.ne.s32.totalorder %s70, %s73
      %p79 = scmp.eq.s32.totalorder %s12, 0
      %p80 = por %p78, %p79
      %p81 = scmp.ne.s32.totalorder %s70, %s73
      %p82 = scmp.eq.s32.totalorder %s17, 1
      %p83 = por %p81, %p82
      %p84 = scmp.ne.s32.totalorder %s73, %s74
      %p85 = scmp.eq.s32.totalorder %s17, 0
      %p86 = por %p84, %p85
      %p87 = scmp.ne.s32.totalorder %s73, %s74
      %p88 = scmp.eq.s32.totalorder %s18, 1
      %p89 = por %p87, %p88
      %p91 = scmp.ne.s32.totalorder %s74, %s90
      %p92 = scmp.eq.s32.totalorder %s18, 0
      %p93 = por %p91, %p92
      %s95 = sadd.s32 %s94, 1
      %p98 = scmp.eq.s32.totalorder %s12, 1
      %p99 = scmp.ne.s32.totalorder %s94, %s96
      %p100 = scmp.eq.s32.totalorder %s12, 0
      %p101 = por %p99, %p100
      %p102 = scmp.ne.s32.totalorder %s94, %s96
      %p103 = scmp.eq.s32.totalorder %s17, 1
      %p104 = por %p102, %p103
      %p105 = scmp.ne.s32.totalorder %s96, %s97
      %p106 = scmp.eq.s32.totalorder %s17, 0
      %p107 = por %p105, %p106
      %p108 = scmp.ne.s32.totalorder %s96, %s97
      %p109 = scmp.eq.s32.totalorder %s18, 1
      %p110 = por %p108, %p109
      %p112 = scmp.ne.s32.totalorder %s97, %s111
      %p113 = scmp.eq.s32.totalorder %s18, 0
      %p114 = por %p112, %p113
      %s115 = ssub.s32 %s19, %s31
      %s116 = ssub.s32 %s20, %s27
      %s117 = sor.u32 %s115, %s116
      %p118 = scmp.eq.s32.totalorder %s117, 0
      %s120 = sadd.s32 %s119, 1
      %s121 = scalar_select %p118, %s119, %s120
      %p124 = pneg %p118
      %p125 = scmp.eq.s32.totalorder %s12, 1
      %p126 = por %p124, %p125
      %p127 = scmp.ne.s32.totalorder %s119, %s122
      %p128 = scmp.eq.s32.totalorder %s12, 0
      %p129 = por %p127, %p128
      %p130 = scmp.ne.s32.totalorder %s119, %s122
      %p131 = scmp.eq.s32.totalorder %s17, 1
      %p132 = por %p130, %p131
      %p133 = scmp.ne.s32.totalorder %s122, %s123
      %p134 = scmp.eq.s32.totalorder %s17, 0
      %p135 = por %p133, %p134
      %p136 = scmp.ne.s32.totalorder %s122, %s123
      %p137 = scmp.eq.s32.totalorder %s18, 1
      %p138 = por %p136, %p137
      %p140 = scmp.ne.s32.totalorder %s123, %s139
      %p141 = scmp.eq.s32.totalorder %s18, 0
      %p142 = por %p140, %p141
      %p143 = scmp.le.s32.totalorder 1, %s12
      %p144 = scmp.lt.s32.totalorder %s12, 3
      %p145 = pnand %p143, %p144
      %p146 = pneg %p145
      // Predicated region
      $region9: #{tpu_custom_call.1} parent=5 // pred_check
        _
      $region10: #{tpu_custom_call.1} parent=5 // pred_check_branch
        %148 = sbr.rel (%p145) target = $region12
      $region11: #{tpu_custom_call.1} parent=5 // pred_region
        %s149 = ssub.s32 %s12, 1
        // Predicated region
        $region13: #{tpu_custom_call.1} parent=11 // pred_check
          %p150 = pneg %p107
        $region14: #{tpu_custom_call.1} parent=11 // pred_check_branch
          %152 = sbr.rel (%p150) target = $region16
        $region15: #{tpu_custom_call.1} parent=11 // pred_region
          _
        $region16: #{tpu_custom_call.1} parent=11 // pred_fallthru
          _
      $region12: #{tpu_custom_call.1} parent=5 // pred_fallthru
        _
      %p153 = scmp.lt.s32.totalorder %s12, 2
      // Predicated region
      $region17: #{tpu_custom_call.1} parent=5 // pred_check
        %p154 = pneg %p153
      $region18: #{tpu_custom_call.1} parent=5 // pred_check_branch
        %156 = sbr.rel (%p154) target = $region20
      $region19: #{tpu_custom_call.1} parent=5 // pred_region
        // Predicated region
        $region21: #{tpu_custom_call.1} parent=19 // pred_check
          %p157 = pneg %p46
        $region22: #{tpu_custom_call.1} parent=19 // pred_check_branch
          %159 = sbr.rel (%p157) target = $region24
        $region23: #{tpu_custom_call.1} parent=19 // pred_region
          %p160 = scmp.lt.s32.totalorder %s19, 1
          %s161 = scalar_select %p160, %s19, 1
          %p162 = scmp.lt.s32.totalorder %s20, 0
          %s163 = scalar_select %p162, %s20, 0
          %s164 = sadd.s32 %s163, %s161
          %s165 = smul.addr %s164, 4
          %s166 = scalar_lea.vmem %s0, %s165
        $region24: #{tpu_custom_call.1} parent=19 // pred_fallthru
          _
        // Predicated region
        $region25: #{tpu_custom_call.1} parent=19 // pred_check
          %p167 = pneg %p80
        $region26: #{tpu_custom_call.1} parent=19 // pred_check_branch
          %169 = sbr.rel (%p167) target = $region28
        $region27: #{tpu_custom_call.1} parent=19 // pred_region
          %s170 = ssub.s32 %s20, 1
          %p171 = scmp.gt.s32.totalorder %s170, 0
          %s172 = scalar_select %p171, %s170, 0
          %p173 = scmp.lt.s32.totalorder %s19, 1
          %s174 = scalar_select %p173, %s19, 1
          %p175 = scmp.lt.s32.totalorder %s172, 0
          %s176 = scalar_select %p175, %s172, 0
          %s177 = sadd.s32 %s176, %s174
          %s178 = smul.addr %s177, 4
          %s179 = scalar_lea.vmem %s1, %s178
          %s180 = ssub.s32 %s20, 1
          %p181 = scmp.gt.s32.totalorder %s180, 0
          %s182 = scalar_select %p181, %s180, 0
        $region28: #{tpu_custom_call.1} parent=19 // pred_fallthru
          _
      $region20: #{tpu_custom_call.1} parent=5 // pred_fallthru
        _
      %p183 = scmp.le.s32.totalorder 1, %s12
      %p184 = scmp.lt.s32.totalorder %s12, 3
      %p185 = pnand %p183, %p184
      %p186 = pneg %p185
      // Predicated region
      $region29: #{tpu_custom_call.1} parent=5 // pred_check
        _
      $region30: #{tpu_custom_call.1} parent=5 // pred_check_branch
        %188 = sbr.rel (%p185) target = $region32
      $region31: #{tpu_custom_call.1} parent=5 // pred_region
        %s189 = ssub.s32 %s12, 1
        %p190 = scmp.lt.s32.totalorder %s21, 1
        %s191 = scalar_select %p190, %s21, 1
        %p192 = scmp.lt.s32.totalorder %s22, 0
        %s193 = scalar_select %p192, %s22, 0
        %s194 = sadd.s32 %s193, %s191
        %s195 = smul.addr %s194, 4
        %s196 = scalar_lea.vmem %s0, %s195
        %p197 = pneg %p52
        %p198 = pneg %p49
        %s199 = ssub.s32 %s22, 1
        %p200 = scmp.gt.s32.totalorder %s199, 0
        %s201 = scalar_select %p200, %s199, 0
        %p202 = scmp.lt.s32.totalorder %s21, 1
        %s203 = scalar_select %p202, %s21, 1
        %p204 = scmp.lt.s32.totalorder %s201, 0
        %s205 = scalar_select %p204, %s201, 0
        %s206 = sadd.s32 %s205, %s203
        %s207 = smul.addr %s206, 4
        %s208 = scalar_lea.vmem %s1, %s207
        %p209 = pneg %p86
        %p210 = pneg %p83
        %p211 = pneg %p107
        %p212 = pneg %p104
        %p213 = pneg %p135
        %p214 = pneg %p132
        %s215 = sand.u32 %s122, 1
        %s216 = scalar_lea.sflag [#allocation3], %s215
        %s217 = sand.u32 %s122, 1
        %s218 = smul.addr %s217, 32
        %s219 = scalar_lea.vmem [#allocation2], %s218
        %p220 = scmp.lt.s32.totalorder %s21, 1
        %s221 = scalar_select %p220, %s21, 1
        %p222 = scmp.lt.s32.totalorder %s22, 0
        %s223 = scalar_select %p222, %s22, 0
        %s224 = sadd.s32 %s223, %s221
        %s225 = smul.addr %s224, 4
        %s226 = scalar_lea.vmem %s0, %s225
        %s227 = ssub.s32 %s22, 1
        %p228 = scmp.gt.s32.totalorder %s227, 0
        %s229 = scalar_select %p228, %s227, 0
        %p230 = scmp.lt.s32.totalorder %s21, 1
        %s231 = scalar_select %p230, %s21, 1
        %p232 = scmp.lt.s32.totalorder %s229, 0
        %s233 = scalar_select %p232, %s229, 0
        %s234 = sadd.s32 %s233, %s231
        %s235 = smul.addr %s234, 4
        %s236 = scalar_lea.vmem %s1, %s235
        %s237 = ssub.s32 %s22, 1
        %p238 = scmp.gt.s32.totalorder %s237, 0
        %s239 = scalar_select %p238, %s237, 0
        %v240 = vld [vmem:[%s226] sm:$0xf]
        %v241 = vld [vmem:[%s236] sm:$0xf]
        %p242 = scmp.eq.s32.totalorder %s22, 0
        %s243 = scalar_select %p242, 1, 0
        %v244 = vstv %s243
        %vm245 = vcmp.eq.s32.totalorder %v244, 1
        %v246 = vsel %vm245, 0.0, %v241
        %248 = vrot.lane.b32.xlu0 %v246, 4
        %v249 = vpop.permute.xlu0 %248
        %252 = vrot.lane.b32.xlu0 %v240, 4
        %v253 = vpop.permute.xlu0 %252
        %vm255 = vcmask 31744
        %v256 = vsel %vm255, %v249, %v253
        %v258 = vrot.slane %v256, 4
        %v259 = vrot.slane %v253, 4
        %260 = vrot.lane.b32.xlu0 %v258, 126
        %v261 = vpop.permute.xlu0 %260
        %262 = vrot.lane.b32.xlu0 %v259, 126
        %v263 = vpop.permute.xlu0 %262
        %vm264 = vcmask 1031168
        %v265 = vsel %vm264, %v261, %v263
        %267 = vrot.lane.b32.xlu0 %v256, 124
        %v268 = vpop.permute.xlu0 %267
        %269 = vrot.lane.b32.xlu0 %v253, 124
        %v270 = vpop.permute.xlu0 %269
        %vm271 = vcmask 1014784
        %v272 = vsel %vm271, %v268, %v270
        %vm274 = vcmask 1043456
        %v275 = vsel %vm274, %v256, %v265
        %v276 = vsel %vm274, %v272, 1.0
        %v277 = vld [vmem:[%s2] sm:$0xff]
        %v278 = vld [vmem:[%s2 + $0x8] sm:$0xff]
        %v279 = vld [vmem:[%s2 + $0x10] sm:$0xff]
        %v280 = vld [vmem:[%s2 + $0x18] sm:$0xff]
        %v281 = vld [vmem:[%s2 + $0x20] sm:$0xff]
        %v282 = vld [vmem:[%s2 + $0x28] sm:$0xff]
        %v283 = vld [vmem:[%s2 + $0x30] sm:$0xff]
        %v284 = vld [vmem:[%s2 + $0x38] sm:$0xff]
        %v285 = vld [vmem:[%s2 + $0x40] sm:$0xff]
        %v286 = vld [vmem:[%s2 + $0x48] sm:$0xff]
        %v287 = vld [vmem:[%s2 + $0x50] sm:$0xff]
        %v288 = vld [vmem:[%s2 + $0x58] sm:$0xff]
        %vm289 = vcmask 105472
        %v291 = vsel %vm289, %v277, 0
        %v294 = vsel %vm289, %v278, 0
        %v297 = vsel %vm289, %v279, 0
        %v300 = vsel %vm289, %v280, 0
        %v303 = vsel %vm289, %v281, 0
        %v306 = vsel %vm289, %v282, 0
        %v309 = vsel %vm289, %v283, 0
        %v312 = vsel %vm289, %v284, 0
        %v315 = vsel %vm289, %v285, 0
        %v318 = vsel %vm289, %v286, 0
        %v321 = vsel %vm289, %v287, 0
        %v324 = vsel %vm289, %v288, 0
        %vm326 = vcmask 1044480
        %v328 = vsel %vm326, %v276, 0
        %330 = vmatprep.subr.mxu0 0.0
        %331 = vmatpush1.msra.mxu0 %v275
        %332 = vmatprep.subr.mxu0 0.0
        %333 = vmatpush1.msra.mxu0 %v328
        %334 = vmatprep.subr.mxu0 0.0
        %335 = vmatpush1.msra.mxu0 0.0
        %336 = vmatprep.subr.mxu0 0.0
        %337 = vmatpush1.msra.mxu0 0.0
        %338 = vmatprep.subr.mxu0 0.0
        %339 = vmatpush1.msra.mxu0 0.0
        %340 = vmatprep.subr.mxu0 0.0
        %341 = vmatpush1.msra.mxu0 0.0
        %342 = vmatprep.subr.mxu0 0.0
        %343 = vmatpush1.msra.mxu0 0.0
        %344 = vmatprep.subr.mxu0 0.0
        %345 = vmatpush1.msra.mxu0 0.0
        %346 = vmatprep.subr.mxu0 0.0
        %347 = vmatpush1.msra.mxu0 0.0
        %348 = vmatprep.subr.mxu0 0.0
        %349 = vmatpush1.msra.mxu0 0.0
        %350 = vmatprep.subr.mxu0 0.0
        %351 = vmatpush1.msra.mxu0 0.0
        %352 = vmatprep.subr.mxu0 0.0
        %353 = vmatpush1.msra.mxu0 0.0
        %354 = vmatprep.subr.mxu0 0.0
        %355 = vmatpush1.msra.mxu0 0.0
        %356 = vmatprep.subr.mxu0 0.0
        %357 = vmatpush1.msra.mxu0 0.0
        %358 = vmatprep.subr.mxu0 0.0
        %359 = vmatpush1.msra.mxu0 0.0
        %360 = vmatprep.subr.mxu0 0.0
        %361 = vmatpush1.msra.mxu0 0.0
        %362 = vmatprep.subr.mxu0 0.0
        %363 = vmatpush1.msra.mxu0 0.0
        %364 = vmatprep.subr.mxu0 0.0
        %365 = vmatpush1.msra.mxu0 0.0
        %366 = vmatprep.subr.mxu0 0.0
        %367 = vmatpush1.msra.mxu0 0.0
        %368 = vmatprep.subr.mxu0 0.0
        %369 = vmatpush1.msra.mxu0 0.0
        %370 = vmatprep.subr.mxu0 0.0
        %371 = vmatpush1.msra.mxu0 0.0
        %372 = vmatprep.subr.mxu0 0.0
        %373 = vmatpush1.msra.mxu0 0.0
        %374 = vmatprep.subr.mxu0 0.0
        %375 = vmatpush1.msra.mxu0 0.0
        %376 = vmatprep.subr.mxu0 0.0
        %377 = vmatpush1.msra.mxu0 0.0
        %378 = vmatprep.subr.mxu0 0.0
        %379 = vmatpush1.msra.mxu0 0.0
        %380 = vmatprep.subr.mxu0 0.0
        %381 = vmatpush1.msra.mxu0 0.0
        %382 = vmatprep.subr.mxu0 0.0
        %383 = vmatpush1.msra.mxu0 0.0
        %384 = vmatprep.subr.mxu0 0.0
        %385 = vmatpush1.msra.mxu0 0.0
        %386 = vmatprep.subr.mxu0 0.0
        %387 = vmatpush1.msra.mxu0 0.0
        %388 = vmatprep.subr.mxu0 0.0
        %389 = vmatpush1.msra.mxu0 0.0
        %390 = vmatprep.subr.mxu0 0.0
        %391 = vmatpush1.msra.mxu0 0.0
        %392 = vmatprep.subr.mxu0 0.0
        %393 = vmatpush1.msra.mxu0 0.0
        %394 = vmatprep.mubr.f32.mxu0 0.0
        %395 = vmatmul.mubr.f32.gmra.mrb[0].mxu0 %v291
        %v396 = vpop.f32.mrb[0].mxu0
        %v397 = vadd.f32 0.0, %v396
        %v398 = vpop.f32.mrb[0].mxu0
        %399 = vmatprep.mubr.f32.mxu0 0.0
        %400 = vmatmul.mubr.f32.gmra.mrb[0].mxu0 %v294
        %v401 = vpop.f32.mrb[0].mxu0
        %v402 = vadd.f32 0.0, %v401
        %v403 = vpop.f32.mrb[0].mxu0
        %404 = vmatprep.mubr.f32.mxu0 0.0
        %405 = vmatmul.mubr.f32.gmra.mrb[0].mxu0 %v297
        %v406 = vpop.f32.mrb[0].mxu0
        %v407 = vadd.f32 0.0, %v406
        %v408 = vpop.f32.mrb[0].mxu0
        %409 = vmatprep.mubr.f32.mxu0 0.0
        %410 = vmatmul.mubr.f32.gmra.mrb[0].mxu0 %v300
        %v411 = vpop.f32.mrb[0].mxu0
        %v412 = vadd.f32 0.0, %v411
        %v413 = vpop.f32.mrb[0].mxu0
        %414 = vmatprep.mubr.f32.mxu0 0.0
        %415 = vmatmul.mubr.f32.gmra.mrb[0].mxu0 %v303
        %v416 = vpop.f32.mrb[0].mxu0
        %v417 = vadd.f32 0.0, %v416
        %v418 = vpop.f32.mrb[0].mxu0
        %419 = vmatprep.mubr.f32.mxu0 0.0
        %420 = vmatmul.mubr.f32.gmra.mrb[0].mxu0 %v306
        %v421 = vpop.f32.mrb[0].mxu0
        %v422 = vadd.f32 0.0, %v421
        %v423 = vpop.f32.mrb[0].mxu0
        %424 = vmatprep.mubr.f32.mxu0 0.0
        %425 = vmatmul.mubr.f32.gmra.mrb[0].mxu0 %v309
        %v426 = vpop.f32.mrb[0].mxu0
        %v427 = vadd.f32 0.0, %v426
        %v428 = vpop.f32.mrb[0].mxu0
        %429 = vmatprep.mubr.f32.mxu0 0.0
        %430 = vmatmul.mubr.f32.gmra.mrb[0].mxu0 %v312
        %v431 = vpop.f32.mrb[0].mxu0
        %v432 = vadd.f32 0.0, %v431
        %v433 = vpop.f32.mrb[0].mxu0
        %434 = vmatprep.mubr.f32.mxu0 0.0
        %435 = vmatmul.mubr.f32.gmra.mrb[0].mxu0 %v315
        %v436 = vpop.f32.mrb[0].mxu0
        %v437 = vadd.f32 0.0, %v436
        %v438 = vpop.f32.mrb[0].mxu0
        %439 = vmatprep.mubr.f32.mxu0 0.0
        %440 = vmatmul.mubr.f32.gmra.mrb[0].mxu0 %v318
        %v441 = vpop.f32.mrb[0].mxu0
        %v442 = vadd.f32 0.0, %v441
        %v443 = vpop.f32.mrb[0].mxu0
        %444 = vmatprep.mubr.f32.mxu0 0.0
        %445 = vmatmul.mubr.f32.gmra.mrb[0].mxu0 %v321
        %v446 = vpop.f32.mrb[0].mxu0
        %v447 = vadd.f32 0.0, %v446
        %v448 = vpop.f32.mrb[0].mxu0
        %449 = vmatprep.mubr.f32.mxu0 0.0
        %450 = vmatmul.mubr.f32.gmra.mrb[0].mxu0 %v324
        %v451 = vpop.f32.mrb[0].mxu0
        %v452 = vadd.f32 0.0, %v451
        %v453 = vpop.f32.mrb[0].mxu0
        %454 = vdwg.mxu0
        %v455 = vtanh.pop %v397
        %v456 = vtanh.pop %v402
        %v457 = vtanh.pop %v407
        %v458 = vtanh.pop %v412
        %v459 = vmul.f32 %v417, 0.5
        %v460 = vmul.f32 %v422, 0.5
        %v461 = vmul.f32 %v427, 0.5
        %v462 = vmul.f32 %v432, 0.5
        %v463 = vtanh.pop %v459
        %v464 = vtanh.pop %v460
        %v465 = vtanh.pop %v461
        %v466 = vtanh.pop %v462
        %v467 = vadd.f32 %v463, 1.0
        %v468 = vadd.f32 %v464, 1.0
        %v469 = vadd.f32 %v465, 1.0
        %v470 = vadd.f32 %v466, 1.0
        %v471 = vmul.f32 %v467, 0.5
        %v472 = vmul.f32 %v468, 0.5
        %v473 = vmul.f32 %v469, 0.5
        %v474 = vmul.f32 %v470, 0.5
        %v475 = vmul.f32 %v455, %v471
        %v476 = vmul.f32 %v456, %v472
        %v477 = vmul.f32 %v457, %v473
        %v478 = vmul.f32 %v458, %v474
        %v479 = vadd.f32 %v475, %v437
        %v480 = vadd.f32 %v476, %v442
        %v481 = vadd.f32 %v477, %v447
        %v482 = vadd.f32 %v478, %v452
        %v483 = vmax.f32 %v479, 0.0
        %v484 = vmax.f32 %v480, 0.0
        %v485 = vmax.f32 %v481, 0.0
        %v486 = vmax.f32 %v482, 0.0
        %487 = vst [vmem:[%s219] sm:$0xff] %v483
        %488 = vst [vmem:[%s219 + $0x8] sm:$0xff] %v484
        %489 = vst [vmem:[%s219 + $0x10] sm:$0xff] %v485
        %490 = vst [vmem:[%s219 + $0x18] sm:$0xff] %v486
        %s491 = sand.u32 %s122, 1
        %s492 = scalar_lea.sflag [#allocation3], %s491
        %s493 = sand.u32 %s122, 1
        %s494 = smul.addr %s493, 32
        %s495 = scalar_lea.vmem [#allocation2], %s494
        // Predicated region
        $region33: #{tpu_custom_call.1} parent=31 // pred_check
          %p496 = pneg %p132
        $region34: #{tpu_custom_call.1} parent=31 // pred_check_branch
          %498 = sbr.rel (%p496) target = $region36
        $region35: #{tpu_custom_call.1} parent=31 // pred_region
          %s500 = ssub.s32 512, 512
          %501 = vsyncadd %s492, %s500
          %s502 = smul.addr %s21, 4
          %s503 = sadd.s32 %s22, %s502
          %s504 = smul.addr %s503, 128
          %s505 = scalar_lea.hbm %s3, %s504
          %s506 = sshll.u32 %s495, 4
          %s507 = int_to_ptr.vmem [resolvable:$true] %s506
          %512 = dma.vmem_to_hbm [thread:$0]  %s507, 512, %s505, %s492, 128, 128, 8
        $region36: #{tpu_custom_call.1} parent=31 // pred_fallthru
          _
      $region32: #{tpu_custom_call.1} parent=5 // pred_fallthru
        _
      %p513 = scmp.le.s32.totalorder 2, %s12
      // Predicated region
      $region37: #{tpu_custom_call.1} parent=5 // pred_check
        %p514 = pneg %p513
      $region38: #{tpu_custom_call.1} parent=5 // pred_check_branch
        %516 = sbr.rel (%p514) target = $region40
      $region39: #{tpu_custom_call.1} parent=5 // pred_region
        %s517 = ssub.s32 %s12, 2
        // Predicated region
        $region41: #{tpu_custom_call.1} parent=39 // pred_check
          %p518 = pneg %p138
        $region42: #{tpu_custom_call.1} parent=39 // pred_check_branch
          %520 = sbr.rel (%p518) target = $region44
        $region43: #{tpu_custom_call.1} parent=39 // pred_region
          %s521 = sand.u32 %s123, 1
          %s522 = scalar_lea.sflag [#allocation3], %s521
          %s523 = sand.u32 %s123, 1
          %s524 = smul.addr %s523, 32
          %s525 = scalar_lea.vmem [#allocation2], %s524
          %526 = dma.done %s522, 512
        $region44: #{tpu_custom_call.1} parent=39 // pred_fallthru
          _
      $region40: #{tpu_custom_call.1} parent=5 // pred_fallthru
        _
    $region6: #{tpu_custom_call.1} parent=1 // loop_footer
      %s16 = sadd.s32 1, %s12
    $region7: #{tpu_custom_call.1} parent=1 // loop_footer_branch
      %11 = sbr.rel target = $region3
    $region8: #{tpu_custom_call.1} parent=1 // loop_exit
      _
    %527 = vsyncpa [#allocation3], 1
    %s528 = scalar_lea.sflag [#allocation3], 1
    %529 = vsyncpa %s528, 1

</llo_original>
